<compile_context>
chip_gen: v6e
topology: v6e:2x2x1
jax: 0.10.0
libtpu: 0.0.40
codegen_flags: <defaults>
</compile_context>

<pallas_src>
import math

import jax
import jax.numpy as jnp
from jax import lax
from jax.experimental import pallas as pl
from jax.experimental.pallas import tpu as pltpu


# ------------------------- generation-aware budgets -------------------------

def _vmem_budgets():
    cap = 64 * 1024 * 1024          # conservative fallback (v7x per-TC VMEM)
    try:
        cap = int(pltpu.get_tpu_info().vmem_capacity_bytes)
    except Exception:
        pass
    limit = int(cap * 0.70)         # leaves headroom for Mosaic scratch
    tile_budget = int(cap * 0.45)   # working-set budget for the tile chooser
    return limit, tile_budget


_VMEM_LIMIT, _TILE_BUDGET = _vmem_budgets()


# ------------------------------ tile helpers ------------------------------

def _round_up(x, m):
    return ((x + m - 1) // m) * m


def _pick_tile(n, prefs):
    """Largest preferred tile that divides n, else the full dimension."""
    for p in prefs:
        if n % p == 0:
            return p
    return n


def _choose_t_tile(T, B, H, n_dirs, budget):
    """Largest divisor of T whose recurrence working set fits the budget."""
    def est(tt):
        gi = 2 * n_dirs * tt * B * 3 * H * 2    # bf16 gi streams, 2x buffered
        out = 2 * n_dirs * tt * B * H * 4       # f32 outputs, 2x buffered
        wts = n_dirs * (3 * H * H * 2 + H * 4) + B * 4
        scr = n_dirs * B * H * 4                # carried hidden state
        return gi + out + wts + scr + (1 << 16)
    fitting = [tt for tt in range(1, T + 1) if T % tt == 0 and est(tt) <= budget]
    return max(fitting) if fitting else 1


def _choose_combine_tile(T, B, H, budget):
    cap = max(1, budget // (6 * B * H * 4))
    fitting = [tt for tt in range(1, T + 1) if T % tt == 0 and tt <= cap]
    return max(fitting) if fitting else 1


# ----------------------- input projection (big matmul) -----------------------

def _matmul_bias_kernel(x_ref, w_ref, b_ref, o_ref):
    o_ref[...] = (jnp.dot(x_ref[...], w_ref[...],
                          preferred_element_type=jnp.float32)
                  + b_ref[...]).astype(o_ref.dtype)


def _input_projection(x2d, w, b):
    """gi = x2d @ w + b.  x2d:(M,K) bf16, w:(K,N) bf16, b:(1,N) f32 -> (M,N) bf16."""
    M, K = x2d.shape
    N = w.shape[1]
    tm = _pick_tile(M, (512, 256, 128, 64, 32, 16, 8))
    tn = _pick_tile(N, (1024, 512, 256, 128))
    return pl.pallas_call(
        _matmul_bias_kernel,
        out_shape=jax.ShapeDtypeStruct((M, N), jnp.bfloat16),
        grid_spec=pltpu.PrefetchScalarGridSpec(
            num_scalar_prefetch=0,
            grid=(M // tm, N // tn),
            in_specs=[pl.BlockSpec((tm, K), lambda i, j: (i, 0)),
                      pl.BlockSpec((K, tn), lambda i, j: (0, j)),
                      pl.BlockSpec((1, tn), lambda i, j: (0, j))],
            out_specs=pl.BlockSpec((tm, tn), lambda i, j: (i, j))),
        compiler_params=pltpu.CompilerParams(
            dimension_semantics=("parallel", "parallel"),
            vmem_limit_bytes=_VMEM_LIMIT),
    )(x2d, w, b)


# ------------------------------ GRU cell math ------------------------------

def _gru_cell(gi_t, gh, h, b_hn, H):
    # gate column offsets are multiples of 128 because H is padded to 128.
    r = jax.nn.sigmoid(gi_t[:, :H] + gh[:, :H])
    z = jax.nn.sigmoid(gi_t[:, H:2 * H] + gh[:, H:2 * H])
    n = jnp.tanh(gi_t[:, 2 * H:] + r * (gh[:, 2 * H:] + b_hn))
    return (1.0 - z) * n + z * h


# ------------------ fused bidirectional recurrence kernel ------------------

def _make_bigru_kernel(T_tile, n_t, B, H):
    def kernel(gi_f_ref, gi_b_ref, len_ref, w_f_ref, w_b_ref, b_hn_ref,
               out_f_ref, out_b_ref, h_ref):
        @pl.when(pl.program_id(0) == 0)
        def _():
            h_ref[...] = jnp.zeros_like(h_ref)

        # ---- hoisted out of the serial loop -------------------------------
        w_f = w_f_ref[...]                                     # (H, 3H) bf16
        w_b = w_b_ref[...]
        b_hn_f = jnp.broadcast_to(b_hn_ref[0:1, :], (B, H))    # (B, H) f32
        b_hn_b = jnp.broadcast_to(b_hn_ref[1:2, :], (B, H))
        lens = len_ref[...]                                    # (B, 1) int32

        s = pl.program_id(0)
        t0_f = s * T_tile                  # global time of fwd local index 0
        t0_b = (n_t - 1 - s) * T_tile      # global time of bwd local index 0

        # ---- serial recurrence: both directions advance per iteration -----
        def body(j, carry):
            h_f, h_b = carry
            i_b = T_tile - 1 - j
            gi_f_t = gi_f_ref[j]           # (B, 3H) bf16 (biases folded in)
            gi_b_t = gi_b_ref[i_b]
            gh_f = jnp.dot(h_f.astype(jnp.bfloat16), w_f,
                           preferred_element_type=jnp.float32)
            gh_b = jnp.dot(h_b.astype(jnp.bfloat16), w_b,
                           preferred_element_type=jnp.float32)
            h_f_new = _gru_cell(gi_f_t, gh_f, h_f, b_hn_f, H)
            h_b_new = _gru_cell(gi_b_t, gh_b, h_b, b_hn_b, H)
            # pack_padded / pad_packed semantics: zero state + output at pads
            # (also gives the backward direction its zero init at t = len-1).
            h_f_new = jnp.where((t0_f + j) < lens, h_f_new, 0.0)
            h_b_new = jnp.where((t0_b + i_b) < lens, h_b_new, 0.0)
            out_f_ref[j] = h_f_new         # write directly, no acc scratch
            out_b_ref[i_b] = h_b_new
            return (h_f_new, h_b_new)

        h_f, h_b = lax.fori_loop(0, T_tile, body, (h_ref[0], h_ref[1]),
                                 unroll=2)
        h_ref[0] = h_f
        h_ref[1] = h_b

    return kernel


def _bigru_recurrence(gi, lens_b1, w_f_t, w_b_t, b_hn2):
    """gi: (T, B, 6H) bf16 — forward gates in columns [:3H], backward in [3H:]."""
    T, B, H6 = gi.shape
    H = H6 // 6
    t_tile = _choose_t_tile(T, B, H, n_dirs=2, budget=_TILE_BUDGET)
    n_t = T // t_tile

    fwd = lambda t: (t, 0, 0)
    rev_gi = lambda t: (n_t - 1 - t, 0, 1)     # reversed blocks, column half 1
    rev_out = lambda t: (n_t - 1 - t, 0, 0)
    const2 = lambda t: (0, 0)

    kernel = _make_bigru_kernel(t_tile, n_t, B, H)
    # TODO(synk): on v7x a leading core-parallel batch-split axis would use
    # both TensorCores; left out because it doubles the serial path on
    # single-core v5e/v6e and core count is not reliably queryable here.
    return pl.pallas_call(
        kernel,
        out_shape=(jax.ShapeDtypeStruct((T, B, H), jnp.float32),
                   jax.ShapeDtypeStruct((T, B, H), jnp.float32)),
        grid_spec=pltpu.PrefetchScalarGridSpec(
            num_scalar_prefetch=0,
            grid=(n_t,),
            in_specs=[pl.BlockSpec((t_tile, B, 3 * H), fwd),     # gi forward
                      pl.BlockSpec((t_tile, B, 3 * H), rev_gi),  # gi backward
                      pl.BlockSpec((B, 1), const2),              # lengths
                      pl.BlockSpec((H, 3 * H), const2),          # W_hh_f^T
                      pl.BlockSpec((H, 3 * H), const2),          # W_hh_b^T
                      pl.BlockSpec((2, H), const2)],             # b_hn (f,b)
            out_specs=(pl.BlockSpec((t_tile, B, H), fwd),
                       pl.BlockSpec((t_tile, B, H), rev_out)),
            scratch_shapes=[pltpu.VMEM((2, B, H), jnp.float32)]),
        compiler_params=pltpu.CompilerParams(
            dimension_semantics=("arbitrary",),
            vmem_limit_bytes=_VMEM_LIMIT),
    )(gi, gi, lens_b1, w_f_t, w_b_t, b_hn2)


# --------------------- unidirectional recurrence kernel ---------------------

def _make_gru_kernel(T_tile, B, H, l2norm_out):
    def kernel(gi_ref, len_ref, w_ref, b_hn_ref, out_ref, h_ref):
        @pl.when(pl.program_id(0) == 0)
        def _():
            h_ref[...] = jnp.zeros_like(h_ref)

        w = w_ref[...]                                        # (H, 3H) bf16
        b_hn = jnp.broadcast_to(b_hn_ref[...], (B, H))
        lens = len_ref[...]
        t0 = pl.program_id(0) * T_tile

        def body(j, h):
            gi_t = gi_ref[j]
            gh = jnp.dot(h.astype(jnp.bfloat16), w,
                         preferred_element_type=jnp.float32)
            h_new = _gru_cell(gi_t, gh, h, b_hn, H)
            h_new = jnp.where((t0 + j) < lens, h_new, 0.0)
            out_ref[j] = h_new
            return h_new

        h_ref[...] = lax.fori_loop(0, T_tile, body, h_ref[...], unroll=2)

        if l2norm_out:
            c = out_ref[...]
            norm = jnp.sqrt(jnp.sum(c * c, axis=-1, keepdims=True)) + 1e-8
            out_ref[...] = c / norm

    return kernel


def _gru_recurrence(gi, lens_b1, w_hh_t, b_hn, *, l2norm_out):
    T, B, H3 = gi.shape
    H = H3 // 3
    t_tile = _choose_t_tile(T, B, H, n_dirs=1, budget=_TILE_BUDGET)
    n_t = T // t_tile
    fwd = lambda t: (t, 0, 0)
    const2 = lambda t: (0, 0)
    kernel = _make_gru_kernel(t_tile, B, H, l2norm_out)
    return pl.pallas_call(
        kernel,
        out_shape=jax.ShapeDtypeStruct((T, B, H), jnp.float32),
        grid_spec=pltpu.PrefetchScalarGridSpec(
            num_scalar_prefetch=0,
            grid=(n_t,),
            in_specs=[pl.BlockSpec((t_tile, B, 3 * H), fwd),
                      pl.BlockSpec((B, 1), const2),
                      pl.BlockSpec((H, 3 * H), const2),
                      pl.BlockSpec((1, H), const2)],
            out_specs=pl.BlockSpec((t_tile, B, H), fwd),
            scratch_shapes=[pltpu.VMEM((B, H), jnp.float32)]),
        compiler_params=pltpu.CompilerParams(
            dimension_semantics=("arbitrary",),
            vmem_limit_bytes=_VMEM_LIMIT),
    )(gi, lens_b1, w_hh_t, b_hn)


# -------------------- combine kernel (avg dirs + l2norm) --------------------

def _make_combine_kernel(no_txtnorm):
    def kernel(f_ref, b_ref, o_ref):
        c = (f_ref[...] + b_ref[...]) * 0.5
        if not no_txtnorm:
            norm = jnp.sqrt(jnp.sum(c * c, axis=-1, keepdims=True)) + 1e-8
            c = c / norm
        o_ref[...] = c
    return kernel


def _combine(out_f, out_b, no_txtnorm):
    T, B, H = out_f.shape
    tt = _choose_combine_tile(T, B, H, _TILE_BUDGET)
    return pl.pallas_call(
        _make_combine_kernel(no_txtnorm),
        out_shape=jax.ShapeDtypeStruct((T, B, H), jnp.float32),
        grid_spec=pltpu.PrefetchScalarGridSpec(
            num_scalar_prefetch=0,
            grid=(T // tt,),
            in_specs=[pl.BlockSpec((tt, B, H), lambda t: (t, 0, 0)),
                      pl.BlockSpec((tt, B, H), lambda t: (t, 0, 0))],
            out_specs=pl.BlockSpec((tt, B, H), lambda t: (t, 0, 0))),
        compiler_params=pltpu.CompilerParams(
            dimension_semantics=("parallel",),
            vmem_limit_bytes=_VMEM_LIMIT),
    )(out_f, out_b)


# ----------------------------- parameter init -----------------------------

def init_encoder_text_params(key, vocab_size, txt_dim, embed_dim, num_layers,
                             use_bi_gru):
    params = {}
    key, k_emb = jax.random.split(key)
    params["embed"] = jax.random.uniform(
        k_emb, (vocab_size, txt_dim), jnp.float32, -0.1, 0.1)

    k = 1.0 / math.sqrt(embed_dim)
    directions = 2 if use_bi_gru else 1
    gru = []
    for layer in range(num_layers):
        d_in = txt_dim if layer == 0 else embed_dim * directions
        layer_params = []
        for _ in range(directions):
            key, k1, k2, k3, k4 = jax.random.split(key, 5)
            w_ih = jax.random.uniform(k1, (3 * embed_dim, d_in), jnp.float32, -k, k)
            w_hh = jax.random.uniform(k2, (3 * embed_dim, embed_dim), jnp.float32, -k, k)
            b_ih = jax.random.uniform(k3, (3 * embed_dim,), jnp.float32, -k, k)
            b_hh = jax.random.uniform(k4, (3 * embed_dim,), jnp.float32, -k, k)
            layer_params.append((w_ih, w_hh, b_ih, b_hh))
        gru.append(layer_params)
    params["gru"] = gru
    return params


# ----------------------------- weight padding -----------------------------

def _pad_gate_rows(w, H, Hp):
    """Pad each of the three gate blocks (along axis 0) from H to Hp rows."""
    if Hp == H:
        return w
    pad = [(0, Hp - H)] + [(0, 0)] * (w.ndim - 1)
    return jnp.concatenate([jnp.pad(w[g * H:(g + 1) * H], pad)
                            for g in range(3)], axis=0)


# ------------------------------- forward pass -------------------------------

def _layer_forward(x2d, lens_b1, layer_params, *, T, B, H, Hp, use_bi_gru,
                   last, no_txtnorm):
    """x2d: (T*B, D_in) bf16 time-major rows.  Returns (final_out, x_next)."""

    def prep(w_ih, w_hh, b_ih, b_hh):
        w_ih_p = _pad_gate_rows(w_ih, H, Hp)                    # (3Hp, D_in)
        w_hh_p = _pad_gate_rows(w_hh, H, Hp)                    # (3Hp, H)
        w_hh_p = jnp.pad(w_hh_p, ((0, 0), (0, Hp - H)))         # (3Hp, Hp)
        b_ih_p = _pad_gate_rows(b_ih, H, Hp)
        b_hh_p = _pad_gate_rows(b_hh, H, Hp)
        # fold b_ih and the r/z parts of b_hh into the input-projection bias;
        # b_hn stays separate (multiplied by r inside the recurrence).
        b_gi = (b_ih_p + jnp.concatenate(
            [b_hh_p[:2 * Hp], jnp.zeros((Hp,), b_hh_p.dtype)])).astype(jnp.float32)
        b_hn = b_hh_p[2 * Hp:].reshape(1, Hp).astype(jnp.float32)
        return (w_ih_p.T.astype(jnp.bfloat16),                  # (D_in, 3Hp)
                w_hh_p.T.astype(jnp.bfloat16),                  # (Hp, 3Hp)
                b_gi, b_hn)

    w_ih_f_t, w_hh_f_t, b_gi_f, b_hn_f = prep(*layer_params[0])

    if use_bi_gru:
        w_ih_b_t, w_hh_b_t, b_gi_b, b_hn_b = prep(*layer_params[1])
        # Hoisted input projection for all timesteps and BOTH directions.
        w_all = jnp.concatenate([w_ih_f_t, w_ih_b_t], axis=1)   # (D_in, 6Hp)
        b_all = jnp.concatenate([b_gi_f, b_gi_b]).reshape(1, 6 * Hp)
        gi = _input_projection(x2d, w_all, b_all).reshape(T, B, 6 * Hp)
        b_hn2 = jnp.concatenate([b_hn_f, b_hn_b], axis=0)       # (2, Hp)
        out_f, out_b = _bigru_recurrence(gi, lens_b1, w_hh_f_t, w_hh_b_t, b_hn2)
        if last:
            return _combine(out_f, out_b, no_txtnorm), None
        # TODO(synk): the two directions could write disjoint column halves of
        # one (T, B, 2H) buffer to avoid this XLA-level slice + concat pass.
        x_next = jnp.concatenate([out_f[..., :H], out_b[..., :H]], axis=-1)
        return None, x_next.reshape(T * B, 2 * H).astype(jnp.bfloat16)
    else:
        b_all = b_gi_f.reshape(1, 3 * Hp)
        gi = _input_projection(x2d, w_ih_f_t, b_all).reshape(T, B, 3 * Hp)
        out = _gru_recurrence(gi, lens_b1, w_hh_f_t, b_hn_f,
                              l2norm_out=(last and not no_txtnorm))
        if last:
            return out, None
        return None, out[..., :H].reshape(T * B, H).astype(jnp.bfloat16)


def encoder_text_forward(params, captions, lengths, *, use_bi_gru,
                         no_txtnorm=False):
    """captions: (B, T) int32, lengths: (B,) int32 -> (B, T, embed_dim) f32."""
    B, T = captions.shape
    H = params["gru"][0][0][1].shape[1]              # embed_dim (from W_hh)
    Hp = _round_up(H, 128)                           # lane-aligned hidden dim
    Bp = _round_up(B, 8)                             # sublane-aligned batch
    Tp = _round_up(T, 8)

    cap_emb = jnp.take(params["embed"], captions, axis=0)        # (B, T, D)
    # TODO(synk): nn.Dropout(0.4) is identity here (inference / eval mode).

    # time-major, zero-padded in T and B (padded entries have length 0)
    x = jnp.transpose(cap_emb, (1, 0, 2))                        # (T, B, D)
    x = jnp.pad(x, ((0, Tp - T), (0, Bp - B), (0, 0)))
    x2d = x.reshape(Tp * Bp, -1).astype(jnp.bfloat16)
    lens_b1 = jnp.pad(lengths.astype(jnp.int32), (0, Bp - B)).reshape(Bp, 1)

    n_layers = len(params["gru"])
    out = None
    for li, layer_params in enumerate(params["gru"]):
        last = (li == n_layers - 1)
        out, x_next = _layer_forward(x2d, lens_b1, layer_params,
                                     T=Tp, B=Bp, H=H, Hp=Hp,
                                     use_bi_gru=use_bi_gru, last=last,
                                     no_txtnorm=no_txtnorm)
        if not last:
            x2d = x_next

    out = out[:T, :B, :H]                                        # strip padding
    return jnp.transpose(out, (1, 0, 2))                         # (B, T, H)


# ----------------------------------- demo -----------------------------------

if __name__ == "__main__":
    vocab_size, txt_dim, embed_dim, num_layers = 100, 32, 32, 1
    use_bi_gru = True
    B, T = 2, 8

    key = jax.random.PRNGKey(0)
    key, k_cap = jax.random.split(key)
    captions = jax.random.randint(k_cap, (B, T), 0, vocab_size, dtype=jnp.int32)
    lengths = jnp.array([8, 5], dtype=jnp.int32)

    params = init_encoder_text_params(key, vocab_size, txt_dim, embed_dim,
                                      num_layers, use_bi_gru)

    out = encoder_text_forward(params, captions, lengths, use_bi_gru=use_bi_gru)
    out = jax.block_until_ready(out)

    assert out.shape == (B, T, embed_dim)
    assert bool(jnp.all(jnp.isfinite(out)))
    print("KERNEL_OK")
</pallas_src>

<mosaic_0001>
module attributes {stable_mosaic.version = 11 : i64} {
  func.func @_matmul_bias_kernel(%arg0: i32, %arg1: i32, %arg2: memref<64x32xbf16, #tpu.memory_space<vmem>>, %arg3: memref<32x256xbf16, #tpu.memory_space<vmem>>, %arg4: memref<1x256xf32, #tpu.memory_space<vmem>>, %arg5: memref<64x256xbf16, #tpu.memory_space<vmem>>) attributes {dimension_semantics = [#tpu.dimension_semantics<parallel>, #tpu.dimension_semantics<parallel>], iteration_bounds = array<i64: 1, 3>, scalar_prefetch = 0 : i64, scratch_operands = 0 : i64, tpu.core_type = #tpu.core_type<tc>, window_params = [{transform_indices = @transform_0, window_bounds = array<i64: 64, 32>}, {transform_indices = @transform_1, window_bounds = array<i64: 32, 256>}, {transform_indices = @transform_2, window_bounds = array<i64: 1, 256>}, {transform_indices = @transform_3, window_bounds = array<i64: 64, 256>}]} {
    %c0 = arith.constant 0 : index
    %c0_0 = arith.constant 0 : index
    %0 = vector.load %arg2[%c0, %c0_0] : memref<64x32xbf16, #tpu.memory_space<vmem>>, vector<64x32xbf16>
    %c0_1 = arith.constant 0 : index
    %c0_2 = arith.constant 0 : index
    %1 = vector.load %arg3[%c0_1, %c0_2] : memref<32x256xbf16, #tpu.memory_space<vmem>>, vector<32x256xbf16>
    %cst = arith.constant dense<0.000000e+00> : vector<64x256xf32>
    %2 = tpu.matmul %0, %1, %cst {dimension_numbers = #tpu.dot_dimension_numbers<[1], [0], [0], [1], [0, 0, 1, 1], [], []>} : vector<64x32xbf16>, vector<32x256xbf16>, vector<64x256xf32> -> vector<64x256xf32>
    %c0_3 = arith.constant 0 : index
    %c0_4 = arith.constant 0 : index
    %3 = vector.load %arg4[%c0_3, %c0_4] : memref<1x256xf32, #tpu.memory_space<vmem>>, vector<1x256xf32>
    %4 = vector.broadcast %3 : vector<1x256xf32> to vector<64x256xf32>
    %5 = arith.addf %2, %4 : vector<64x256xf32>
    %6 = arith.truncf %5 : vector<64x256xf32> to vector<64x256xbf16>
    %c0_5 = arith.constant 0 : index
    %c0_6 = arith.constant 0 : index
    %7 = vector.load %arg5[%c0_5, %c0_6] : memref<64x256xbf16, #tpu.memory_space<vmem>>, vector<64x256xbf16>
    tpu.vector_store %arg5[%c0_5, %c0_6], %6 {strides = array<i32>} : memref<64x256xbf16, #tpu.memory_space<vmem>>, vector<64x256xbf16>,
    return
  }
  func.func @transform_0(%arg0: i32, %arg1: i32) -> (i32, i32) {
    %c0_i32 = arith.constant 0 : i32
    %c0_i32_0 = arith.constant 0 : i32
    return %arg0, %c0_i32 : i32, i32
  }
  func.func @transform_1(%arg0: i32, %arg1: i32) -> (i32, i32) {
    %c0_i32 = arith.constant 0 : i32
    %c0_i32_0 = arith.constant 0 : i32
    return %c0_i32, %arg1 : i32, i32
  }
  func.func @transform_2(%arg0: i32, %arg1: i32) -> (i32, i32) {
    %c0_i32 = arith.constant 0 : i32
    %c0_i32_0 = arith.constant 0 : i32
    return %c0_i32, %arg1 : i32, i32
  }
  func.func @transform_3(%arg0: i32, %arg1: i32) -> (i32, i32) {
    %c0_i32 = arith.constant 0 : i32
    return %arg0, %arg1 : i32, i32
  }
}

</mosaic_0001>

<llo_original>
// kernel: tpu_custom_call.1
$region0: #{tpu_custom_call.1}
  #allocation0 [shape = 'u32[]', space=smem, size = 0x4, offset = 0x4, fixed_abs, tag = 'smem constant byte address 0x4 - core index']
  #allocation1 [shape = 'u32[144,128]{1,0:T(1,128)}', space=vmem, size = 0x12000, scoped, tag = 'internal scratch']
  %s0 = inlined_call_operand.vmem [shape: bf16[64,32], index: 0, kind: input, shape index: {}]
  %s1 = inlined_call_operand.hbm [shape: bf16[32,768], index: 1, kind: input, shape index: {}]
  %s2 = inlined_call_operand.vmem [shape: f32[1,768], index: 2, kind: input, shape index: {}]
  %s3 = inlined_call_operand.hbm [shape: bf16[64,768], index: 3, kind: output, shape index: {}]
  %s4 = sld [smem:[#allocation0]]
  $region49: #{tpu_custom_call.1} parent=0
    _
  %s6 = ssub.s32 1, %s4
  %s7 = scalar_select 0, %s6, %s4
  $region1: #{tpu_custom_call.1} parent=0
    #allocation2 [shape = 'u8[32768]{0}', space=vmem, size = 0x8000, scoped, tag = 'input window, operand 1']
    #allocation3 [shape = 's32[2]{0}', space=sflag, size = 0x8, scoped, tag = 'scoped memory for tpu_custom_call.1']
    #allocation4 [shape = 's32[2]{0}', space=sflag, size = 0x8, scoped, tag = 'scoped memory for tpu_custom_call.1']
    #allocation5 [shape = 'u8[65536]{0}', space=vmem, size = 0x10000, scoped, tag = 'output window, operand 0']
    %8 = vsyncpa [#allocation3], 0
    %s9 = scalar_lea.sflag [#allocation3], 1
    %10 = vsyncpa %s9, 0
    %11 = vsyncpa [#allocation4], 0
    %s12 = scalar_lea.sflag [#allocation4], 1
    %13 = vsyncpa %s12, 0
    loop: start=0, step=1, limit=5
    $region2: #{tpu_custom_call.1} parent=1 // loop_pre_header
      _
    $region3: #{tpu_custom_call.1} parent=1 // loop_header
      %s15 = sphi 0, %s19
      %p16 = scmp.ge.s32.totalorder %s15, 5
      %s22 = sphi 0, %s34
      %s23 = sphi 0, %s30
      %s24 = sphi 0, %s22
      %s25 = sphi 0, %s23
      %s26 = sphi 0, %s24
      %s27 = sphi 0, %s25
      %s37 = sphi 0, %s39
      %s40 = sphi 0, %s37
      %s41 = sphi 0, %s40
      %s57 = sphi 0, %s41
      %s63 = sphi 0, %s65
      %s66 = sphi 0, %s63
      %s67 = sphi 0, %s66
      %s83 = sphi 0, %s67
      %s89 = sphi 0, %s91
      %s92 = sphi 0, %s89
      %s93 = sphi 0, %s92
      %s109 = sphi 0, %s93
      %s117 = sphi 0, %s119
      %s120 = sphi 0, %s117
      %s121 = sphi 0, %s120
      %s137 = sphi 0, %s121
    $region4: #{tpu_custom_call.1} parent=1 // loop_header_branch
      %18 = sbr.rel (%p16) target = $region8
    $region5: #{tpu_custom_call.1} parent=1 // loop_body
      %s20 = ssub.s32 %s15, 1
      %s21 = ssub.s32 %s15, 2
      %s28 = sadd.s32 1, %s23
      %p29 = scmp.ge.s32.totalorder %s28, 3
      %s30 = scalar_select %p29, 0, %s28
      %s31 = sadd.s32 1, %s22
      %s32 = scalar_select %p29, %s31, %s22
      %p33 = scmp.ge.s32.totalorder %s32, 1
      %s34 = scalar_select %p33, 0, %s32
      %s35 = ssub.s32 %s22, %s34
      %p36 = scmp.eq.s32.totalorder %s35, 0
      %s38 = sadd.s32 %s37, 1
      %s39 = scalar_select %p36, %s37, %s38
      %p42 = pneg %p36
      %p43 = scmp.eq.s32.totalorder %s15, 2
      %p44 = por %p42, %p43
      %p45 = scmp.ne.s32.totalorder %s37, %s40
      %p46 = scmp.eq.s32.totalorder %s15, 0
      %p47 = por %p45, %p46
      %p48 = scmp.ne.s32.totalorder %s37, %s40
      %p49 = scmp.eq.s32.totalorder %s20, 2
      %p50 = por %p48, %p49
      %p51 = scmp.ne.s32.totalorder %s40, %s41
      %p52 = scmp.eq.s32.totalorder %s20, 0
      %p53 = por %p51, %p52
      %p54 = scmp.ne.s32.totalorder %s40, %s41
      %p55 = scmp.eq.s32.totalorder %s21, 2
      %p56 = por %p54, %p55
      %p58 = scmp.ne.s32.totalorder %s41, %s57
      %p59 = scmp.eq.s32.totalorder %s21, 0
      %p60 = por %p58, %p59
      %s61 = ssub.s32 %s23, %s30
      %p62 = scmp.eq.s32.totalorder %s61, 0
      %s64 = sadd.s32 %s63, 1
      %s65 = scalar_select %p62, %s63, %s64
      %p68 = pneg %p62
      %p69 = scmp.eq.s32.totalorder %s15, 2
      %p70 = por %p68, %p69
      %p71 = scmp.ne.s32.totalorder %s63, %s66
      %p72 = scmp.eq.s32.totalorder %s15, 0
      %p73 = por %p71, %p72
      %p74 = scmp.ne.s32.totalorder %s63, %s66
      %p75 = scmp.eq.s32.totalorder %s20, 2
      %p76 = por %p74, %p75
      %p77 = scmp.ne.s32.totalorder %s66, %s67
      %p78 = scmp.eq.s32.totalorder %s20, 0
      %p79 = por %p77, %p78
      %p80 = scmp.ne.s32.totalorder %s66, %s67
      %p81 = scmp.eq.s32.totalorder %s21, 2
      %p82 = por %p80, %p81
      %p84 = scmp.ne.s32.totalorder %s67, %s83
      %p85 = scmp.eq.s32.totalorder %s21, 0
      %p86 = por %p84, %p85
      %s87 = ssub.s32 %s23, %s30
      %p88 = scmp.eq.s32.totalorder %s87, 0
      %s90 = sadd.s32 %s89, 1
      %s91 = scalar_select %p88, %s89, %s90
      %p94 = pneg %p88
      %p95 = scmp.eq.s32.totalorder %s15, 2
      %p96 = por %p94, %p95
      %p97 = scmp.ne.s32.totalorder %s89, %s92
      %p98 = scmp.eq.s32.totalorder %s15, 0
      %p99 = por %p97, %p98
      %p100 = scmp.ne.s32.totalorder %s89, %s92
      %p101 = scmp.eq.s32.totalorder %s20, 2
      %p102 = por %p100, %p101
      %p103 = scmp.ne.s32.totalorder %s92, %s93
      %p104 = scmp.eq.s32.totalorder %s20, 0
      %p105 = por %p103, %p104
      %p106 = scmp.ne.s32.totalorder %s92, %s93
      %p107 = scmp.eq.s32.totalorder %s21, 2
      %p108 = por %p106, %p107
      %p110 = scmp.ne.s32.totalorder %s93, %s109
      %p111 = scmp.eq.s32.totalorder %s21, 0
      %p112 = por %p110, %p111
      %s113 = ssub.s32 %s22, %s34
      %s114 = ssub.s32 %s23, %s30
      %s115 = sor.u32 %s113, %s114
      %p116 = scmp.eq.s32.totalorder %s115, 0
      %s118 = sadd.s32 %s117, 1
      %s119 = scalar_select %p116, %s117, %s118
      %p122 = pneg %p116
      %p123 = scmp.eq.s32.totalorder %s15, 2
      %p124 = por %p122, %p123
      %p125 = scmp.ne.s32.totalorder %s117, %s120
      %p126 = scmp.eq.s32.totalorder %s15, 0
      %p127 = por %p125, %p126
      %p128 = scmp.ne.s32.totalorder %s117, %s120
      %p129 = scmp.eq.s32.totalorder %s20, 2
      %p130 = por %p128, %p129
      %p131 = scmp.ne.s32.totalorder %s120, %s121
      %p132 = scmp.eq.s32.totalorder %s20, 0
      %p133 = por %p131, %p132
      %p134 = scmp.ne.s32.totalorder %s120, %s121
      %p135 = scmp.eq.s32.totalorder %s21, 2
      %p136 = por %p134, %p135
      %p138 = scmp.ne.s32.totalorder %s121, %s137
      %p139 = scmp.eq.s32.totalorder %s21, 0
      %p140 = por %p138, %p139
      %p141 = scmp.le.s32.totalorder 1, %s15
      %p142 = scmp.lt.s32.totalorder %s15, 4
      %p143 = pnand %p141, %p142
      %p144 = pneg %p143
      // Predicated region
      $region9: #{tpu_custom_call.1} parent=5 // pred_check
        _
      $region10: #{tpu_custom_call.1} parent=5 // pred_check_branch
        %146 = sbr.rel (%p143) target = $region12
      $region11: #{tpu_custom_call.1} parent=5 // pred_region
        %s147 = ssub.s32 %s15, 1
        // Predicated region
        $region13: #{tpu_custom_call.1} parent=11 // pred_check
          %p148 = pneg %p53
        $region14: #{tpu_custom_call.1} parent=11 // pred_check_branch
          %150 = sbr.rel (%p148) target = $region16
        $region15: #{tpu_custom_call.1} parent=11 // pred_region
          %s151 = smul.u32 8, %s24
          %p152 = scmp.lt.s32.totalorder %s151, 7
          %s153 = scalar_select %p152, %s151, 7
          %s154 = smul.addr %s153, 4
          %s155 = scalar_lea.vmem %s0, %s154
          %s156 = smul.u32 8, %s24
        $region16: #{tpu_custom_call.1} parent=11 // pred_fallthru
          _
      $region12: #{tpu_custom_call.1} parent=5 // pred_fallthru
        _
      %p157 = scmp.lt.s32.totalorder %s15, 3
      // Predicated region
      $region17: #{tpu_custom_call.1} parent=5 // pred_check
        %p158 = pneg %p157
      $region18: #{tpu_custom_call.1} parent=5 // pred_check_branch
        %160 = sbr.rel (%p158) target = $region20
      $region19: #{tpu_custom_call.1} parent=5 // pred_region
        // Predicated region
        $region21: #{tpu_custom_call.1} parent=19 // pred_check
          %p161 = pneg %p73
        $region22: #{tpu_custom_call.1} parent=19 // pred_check_branch
          %163 = sbr.rel (%p161) target = $region24
        $region23: #{tpu_custom_call.1} parent=19 // pred_region
          %s164 = sand.u32 %s63, 1
          %s165 = scalar_lea.sflag [#allocation3], %s164
          %s166 = sand.u32 %s63, 1
          %s167 = smul.addr %s166, 32
          %s168 = scalar_lea.vmem [#allocation2], %s167
          %s169 = smul.u32 2, %s23
          %s171 = ssub.s32 512, 512
          %172 = vsyncadd %s165, %s171
          %s173 = smul.addr %s169, 64
          %s174 = scalar_lea.hbm %s1, %s173
          %s175 = sshll.u32 %s168, 4
          %s176 = int_to_ptr.vmem [resolvable:$true] %s175
          %181 = dma.hbm_to_vmem [thread:$0]  %s174, 512, %s176, %s165, 384, 128, 8
        $region24: #{tpu_custom_call.1} parent=19 // pred_fallthru
          _
        // Predicated region
        $region25: #{tpu_custom_call.1} parent=19 // pred_check
          %p182 = pneg %p99
        $region26: #{tpu_custom_call.1} parent=19 // pred_check_branch
          %184 = sbr.rel (%p182) target = $region28
        $region27: #{tpu_custom_call.1} parent=19 // pred_region
          %s185 = smul.u32 2, %s23
          %p186 = scmp.lt.s32.totalorder %s185, 5
          %s187 = scalar_select %p186, %s185, 5
          %s188 = scalar_lea.vmem %s2, %s187
          %s189 = smul.u32 2, %s23
        $region28: #{tpu_custom_call.1} parent=19 // pred_fallthru
          _
      $region20: #{tpu_custom_call.1} parent=5 // pred_fallthru
        _
      %p190 = scmp.le.s32.totalorder 1, %s15
      %p191 = scmp.lt.s32.totalorder %s15, 4
      %p192 = pnand %p190, %p191
      %p193 = pneg %p192
      // Predicated region
      $region29: #{tpu_custom_call.1} parent=5 // pred_check
        _
      $region30: #{tpu_custom_call.1} parent=5 // pred_check_branch
        %195 = sbr.rel (%p192) target = $region32
      $region31: #{tpu_custom_call.1} parent=5 // pred_region
        %s196 = ssub.s32 %s15, 1
        %s197 = sand.u32 %s66, 1
        %s198 = scalar_lea.sflag [#allocation3], %s197
        %s199 = sand.u32 %s66, 1
        %s200 = smul.addr %s199, 32
        %s201 = scalar_lea.vmem [#allocation2], %s200
        // Predicated region
        $region33: #{tpu_custom_call.1} parent=31 // pred_check
          %p202 = pneg %p79
        $region34: #{tpu_custom_call.1} parent=31 // pred_check_branch
          %204 = sbr.rel (%p202) target = $region36
        $region35: #{tpu_custom_call.1} parent=31 // pred_region
          %205 = dma.done %s198, 512
        $region36: #{tpu_custom_call.1} parent=31 // pred_fallthru
          _
        %s206 = smul.u32 8, %s24
        %p207 = scmp.lt.s32.totalorder %s206, 7
        %s208 = scalar_select %p207, %s206, 7
        %s209 = smul.addr %s208, 4
        %s210 = scalar_lea.vmem %s0, %s209
        %p211 = pneg %p53
        %p212 = pneg %p50
        %s213 = sand.u32 %s66, 1
        %s214 = scalar_lea.sflag [#allocation3], %s213
        %s215 = sand.u32 %s66, 1
        %s216 = smul.addr %s215, 32
        %s217 = scalar_lea.vmem [#allocation2], %s216
        %p218 = pneg %p79
        %p219 = pneg %p76
        %s220 = smul.u32 2, %s25
        %p221 = scmp.lt.s32.totalorder %s220, 5
        %s222 = scalar_select %p221, %s220, 5
        %s223 = scalar_lea.vmem %s2, %s222
        %p224 = pneg %p105
        %p225 = pneg %p102
        %p226 = pneg %p133
        %p227 = pneg %p130
        %s228 = sand.u32 %s120, 1
        %s229 = scalar_lea.sflag [#allocation4], %s228
        %s230 = sand.u32 %s120, 1
        %s231 = smul.addr %s230, 64
        %s232 = scalar_lea.vmem [#allocation5], %s231
        %s233 = smul.u32 8, %s24
        %p234 = scmp.lt.s32.totalorder %s233, 7
        %s235 = scalar_select %p234, %s233, 7
        %s236 = smul.addr %s235, 4
        %s237 = scalar_lea.vmem %s0, %s236
        %s238 = smul.u32 8, %s24
        %s239 = smul.u32 2, %s25
        %s240 = smul.u32 2, %s25
        %p241 = scmp.lt.s32.totalorder %s240, 5
        %s242 = scalar_select %p241, %s240, 5
        %s243 = scalar_lea.vmem %s2, %s242
        %s244 = smul.u32 2, %s25
        %s245 = smul.u32 8, %s24
        %s246 = smul.u32 2, %s25
        %v248 = vld [vmem:[%s237] sm:$0xf]
        %v249 = vld [vmem:[%s237 + $0x4] sm:$0xf]
        %v250 = vld [vmem:[%s237 + $0x8] sm:$0xf]
        %v251 = vld [vmem:[%s237 + $0xc] sm:$0xf]
        %v252 = vld [vmem:[%s237 + $0x10] sm:$0xf]
        %v253 = vld [vmem:[%s237 + $0x14] sm:$0xf]
        %v254 = vld [vmem:[%s237 + $0x18] sm:$0xf]
        %v255 = vld [vmem:[%s237 + $0x1c] sm:$0xf]
        %v256 = vld [vmem:[%s201] sm:$0xff]
        %v257 = vld [vmem:[%s201 + $0x8] sm:$0xff]
        %v258 = vld [vmem:[%s201 + $0x10] sm:$0xff]
        %v259 = vld [vmem:[%s201 + $0x18] sm:$0xff]
        %v260 = vld [vmem:[%s243] sm:$0x3]
        %v262 = vlaneseq
        %v263 = vshrl.u32 %v262, 7
        %v264 = vsub.s32 0, %v263
        %v265 = vrot.slane %v260, %v264
        %v266 = vlaneseq
        %v267 = vshrl.u32 %v266, 7
        %v268 = vsub.s32 1, %v267
        %v269 = vrot.slane %v260, %v268
        %v280 = vunpack.c.l.b16 %v248
        %v281 = vunpack.c.l.b16 %v249
        %v282 = vunpack.c.l.b16 %v250
        %v283 = vunpack.c.l.b16 %v251
        %v284 = vunpack.c.l.b16 %v252
        %v285 = vunpack.c.l.b16 %v253
        %v286 = vunpack.c.l.b16 %v254
        %v287 = vunpack.c.l.b16 %v255
        %v288 = vpack.c.b16 %v281, %v280
        %v289 = vpack.c.b16 %v283, %v282
        %v290 = vpack.c.b16 %v285, %v284
        %v291 = vpack.c.b16 %v287, %v286
        %v296 = vunpack.c.l.b16 %v256
        %v297 = vunpack.c.h.b16 %v256
        %v298 = vunpack.c.l.b16 %v257
        %v299 = vunpack.c.h.b16 %v257
        %v300 = vunpack.c.l.b16 %v258
        %v301 = vunpack.c.h.b16 %v258
        %v302 = vunpack.c.l.b16 %v259
        %v303 = vunpack.c.h.b16 %v259
        %v304 = vpack.c.b16 %v298, %v296
        %v305 = vpack.c.b16 %v299, %v297
        %v306 = vpack.c.b16 %v302, %v300
        %v307 = vpack.c.b16 %v303, %v301
        %vm312 = vcmask 261120
        %v314 = vsel %vm312, %v288, 0
        %v317 = vsel %vm312, %v289, 0
        %v320 = vsel %vm312, %v290, 0
        %v323 = vsel %vm312, %v291, 0
        %325 = vmatprep.subr.bf16.mxu0 0
        %326 = vmatpush1.bf16.msra.mxu0 0
        %327 = vmatprep.subr.bf16.mxu0 0
        %328 = vmatpush1.bf16.msra.mxu0 0
        %329 = vmatprep.subr.bf16.mxu0 0
        %330 = vmatpush1.bf16.msra.mxu0 0
        %331 = vmatprep.subr.bf16.mxu0 0
        %332 = vmatpush1.bf16.msra.mxu0 0
        %333 = vmatprep.subr.bf16.mxu0 0
        %334 = vmatpush1.bf16.msra.mxu0 0
        %335 = vmatprep.subr.bf16.mxu0 0
        %336 = vmatpush1.bf16.msra.mxu0 0
        %337 = vmatprep.subr.bf16.mxu0 %v307
        %338 = vmatpush1.bf16.msra.mxu0 %v306
        %339 = vmatprep.subr.bf16.mxu0 %v305
        %340 = vmatpush1.bf16.msra.mxu0 %v304
        %341 = vmatprep.subr.bf16.mxu0 0
        %342 = vmatpush2.bf16.msra.mxu0 0
        %343 = vmatprep.subr.bf16.mxu0 0
        %344 = vmatpush2.bf16.msra.mxu0 0
        %345 = vmatprep.subr.bf16.mxu0 0
        %346 = vmatpush2.bf16.msra.mxu0 0
        %347 = vmatprep.subr.bf16.mxu0 0
        %348 = vmatpush2.bf16.msra.mxu0 0
        %349 = vmatprep.subr.bf16.mxu0 0
        %350 = vmatpush2.bf16.msra.mxu0 0
        %351 = vmatprep.subr.bf16.mxu0 0
        %352 = vmatpush2.bf16.msra.mxu0 0
        %353 = vmatprep.subr.bf16.mxu0 0
        %354 = vmatpush2.bf16.msra.mxu0 0
        %355 = vmatprep.subr.bf16.mxu0 0
        %356 = vmatpush2.bf16.msra.mxu0 0
        %357 = vmatprep.mubr.bf16.mxu0 0
        %358 = vmatmul.mubr.bf16.gmra.mxu0 %v314
        %v359 = vpop.f32.mrf.mxu0
        %v360 = vadd.f32 %v265, %v359
        %v361 = vpop.f32.mrf.mxu0
        %v362 = vadd.f32 %v269, %v361
        %v363 = vpop.f32.mrf.mxu0
        %v364 = vadd.f32 %v265, %v363
        %v365 = vpop.f32.mrf.mxu0
        %v366 = vadd.f32 %v269, %v365
        %367 = vmatprep.mubr.bf16.mxu0 0
        %368 = vmatmul.mubr.bf16.gmra.mxu0 %v317
        %v369 = vpop.f32.mrf.mxu0
        %v370 = vadd.f32 %v265, %v369
        %v371 = vpop.f32.mrf.mxu0
        %v372 = vadd.f32 %v269, %v371
        %v373 = vpop.f32.mrf.mxu0
        %v374 = vadd.f32 %v265, %v373
        %v375 = vpop.f32.mrf.mxu0
        %v376 = vadd.f32 %v269, %v375
        %377 = vmatprep.mubr.bf16.mxu0 0
        %378 = vmatmul.mubr.bf16.gmra.mxu0 %v320
        %v379 = vpop.f32.mrf.mxu0
        %v380 = vadd.f32 %v265, %v379
        %v381 = vpop.f32.mrf.mxu0
        %v382 = vadd.f32 %v269, %v381
        %v383 = vpop.f32.mrf.mxu0
        %v384 = vadd.f32 %v265, %v383
        %v385 = vpop.f32.mrf.mxu0
        %v386 = vadd.f32 %v269, %v385
        %387 = vmatprep.mubr.bf16.mxu0 0
        %388 = vmatmul.mubr.bf16.gmra.mxu0 %v323
        %v389 = vpop.f32.mrf.mxu0
        %v390 = vadd.f32 %v265, %v389
        %v391 = vpop.f32.mrf.mxu0
        %v392 = vadd.f32 %v269, %v391
        %v393 = vpop.f32.mrf.mxu0
        %v394 = vadd.f32 %v265, %v393
        %v395 = vpop.f32.mrf.mxu0
        %v396 = vadd.f32 %v269, %v395
        %397 = vdwg.mxu0
        %v398 = vpack.c.bf16 %v364, %v360
        %v399 = vpack.c.bf16 %v366, %v362
        %v400 = vpack.c.bf16 %v374, %v370
        %v401 = vpack.c.bf16 %v376, %v372
        %v402 = vpack.c.bf16 %v384, %v380
        %v403 = vpack.c.bf16 %v386, %v382
        %v404 = vpack.c.bf16 %v394, %v390
        %v405 = vpack.c.bf16 %v396, %v392
        %v414 = vunpack.c.l.b16 %v398
        %v415 = vunpack.c.l.b16 %v399
        %v416 = vunpack.c.h.b16 %v398
        %v417 = vunpack.c.h.b16 %v399
        %v418 = vunpack.c.l.b16 %v400
        %v419 = vunpack.c.l.b16 %v401
        %v420 = vunpack.c.h.b16 %v400
        %v421 = vunpack.c.h.b16 %v401
        %v422 = vunpack.c.l.b16 %v402
        %v423 = vunpack.c.l.b16 %v403
        %v424 = vunpack.c.h.b16 %v402
        %v425 = vunpack.c.h.b16 %v403
        %v426 = vunpack.c.l.b16 %v404
        %v427 = vunpack.c.l.b16 %v405
        %v428 = vunpack.c.h.b16 %v404
        %v429 = vunpack.c.h.b16 %v405
        %v430 = vpack.c.b16 %v415, %v414
        %v431 = vpack.c.b16 %v417, %v416
        %v432 = vpack.c.b16 %v419, %v418
        %v433 = vpack.c.b16 %v421, %v420
        %v434 = vpack.c.b16 %v423, %v422
        %v435 = vpack.c.b16 %v425, %v424
        %v436 = vpack.c.b16 %v427, %v426
        %v437 = vpack.c.b16 %v429, %v428
        %446 = vst [vmem:[%s232] sm:$0xff] %v430
        %447 = vst [vmem:[%s232 + $0x8] sm:$0xff] %v431
        %448 = vst [vmem:[%s232 + $0x10] sm:$0xff] %v432
        %449 = vst [vmem:[%s232 + $0x18] sm:$0xff] %v433
        %450 = vst [vmem:[%s232 + $0x20] sm:$0xff] %v434
        %451 = vst [vmem:[%s232 + $0x28] sm:$0xff] %v435
        %452 = vst [vmem:[%s232 + $0x30] sm:$0xff] %v436
        %453 = vst [vmem:[%s232 + $0x38] sm:$0xff] %v437
        %s454 = sand.u32 %s120, 1
        %s455 = scalar_lea.sflag [#allocation4], %s454
        %s456 = sand.u32 %s120, 1
        %s457 = smul.addr %s456, 64
        %s458 = scalar_lea.vmem [#allocation5], %s457
        // Predicated region
        $region37: #{tpu_custom_call.1} parent=31 // pred_check
          %p459 = pneg %p130
        $region38: #{tpu_custom_call.1} parent=31 // pred_check_branch
          %461 = sbr.rel (%p459) target = $region40
        $region39: #{tpu_custom_call.1} parent=31 // pred_region
          %s462 = smul.u32 8, %s24
          %s463 = smul.u32 2, %s25
          %s465 = ssub.s32 1024, 1024
          %466 = vsyncadd %s455, %s465
          %s467 = smul.addr %s462, 6
          %s468 = sadd.s32 %s463, %s467
          %s469 = smul.addr %s468, 64
          %s470 = scalar_lea.hbm %s3, %s469
          %s471 = sshll.u32 %s458, 4
          %s472 = int_to_ptr.vmem [resolvable:$true] %s471
          %477 = dma.vmem_to_hbm [thread:$0]  %s472, 1024, %s470, %s455, 128, 384, 8
        $region40: #{tpu_custom_call.1} parent=31 // pred_fallthru
          _
      $region32: #{tpu_custom_call.1} parent=5 // pred_fallthru
        _
      %p478 = scmp.le.s32.totalorder 2, %s15
      // Predicated region
      $region41: #{tpu_custom_call.1} parent=5 // pred_check
        %p479 = pneg %p478
      $region42: #{tpu_custom_call.1} parent=5 // pred_check_branch
        %481 = sbr.rel (%p479) target = $region44
      $region43: #{tpu_custom_call.1} parent=5 // pred_region
        %s482 = ssub.s32 %s15, 2
        // Predicated region
        $region45: #{tpu_custom_call.1} parent=43 // pred_check
          %p483 = pneg %p136
        $region46: #{tpu_custom_call.1} parent=43 // pred_check_branch
          %485 = sbr.rel (%p483) target = $region48
        $region47: #{tpu_custom_call.1} parent=43 // pred_region
          %s486 = sand.u32 %s121, 1
          %s487 = scalar_lea.sflag [#allocation4], %s486
          %s488 = sand.u32 %s121, 1
          %s489 = smul.addr %s488, 64
          %s490 = scalar_lea.vmem [#allocation5], %s489
          %491 = dma.done %s487, 1024
        $region48: #{tpu_custom_call.1} parent=43 // pred_fallthru
          _
      $region44: #{tpu_custom_call.1} parent=5 // pred_fallthru
        _
    $region6: #{tpu_custom_call.1} parent=1 // loop_footer
      %s19 = sadd.s32 1, %s15
    $region7: #{tpu_custom_call.1} parent=1 // loop_footer_branch
      %14 = sbr.rel target = $region3
    $region8: #{tpu_custom_call.1} parent=1 // loop_exit
      _
    %492 = vsyncpa [#allocation3], 1
    %s493 = scalar_lea.sflag [#allocation3], 1
    %494 = vsyncpa %s493, 1
    %495 = vsyncpa [#allocation4], 1
    %s496 = scalar_lea.sflag [#allocation4], 1
    %497 = vsyncpa %s496, 1

</llo_original>
